<compile_context>
chip_gen: v6e
topology: v6e:2x2x1
jax: 0.10.0
libtpu: 0.0.40
codegen_flags: <defaults>
</compile_context>

<pallas_src>
import math

import jax
import jax.numpy as jnp
from jax.experimental import pallas as pl
from jax.experimental.pallas import tpu as pltpu


def _box_muller_kernel(bits1_ref, bits2_ref, o_ref):
    """Turn two uint32 bit tiles into one f32 tile of i.i.d. N(0,1) samples.

    bits1_ref, bits2_ref: VMEM (tile_r, tile_d) uint32
    o_ref:                VMEM (tile_r, 2*tile_d) float32
    """
    half = bits1_ref.shape[1]
    inv_2_24 = jnp.float32(1.0 / (1 << 24))

    # Top 24 bits -> uniforms. u1 in (0,1) strictly (safe for log), u2 in [0,1).
    u1 = ((bits1_ref[...] >> 8).astype(jnp.float32) + 0.5) * inv_2_24
    u2 = (bits2_ref[...] >> 8).astype(jnp.float32) * inv_2_24

    # Box-Muller with sin/cos pairing: one (u1,u2) pair -> two normals.
    r = jnp.sqrt(-2.0 * jnp.log(u1))
    theta = jnp.float32(2.0 * math.pi) * u2

    o_ref[:, :half] = r * jnp.cos(theta)
    o_ref[:, half:] = r * jnp.sin(theta)


def _round_up(x: int, m: int) -> int:
    return (x + m - 1) // m * m


def _normal_rows(key, rows: int, dim: int):
    """(rows, dim) i.i.d. standard-normal samples via the Pallas kernel."""
    rows = int(rows)
    dim = int(dim)

    # Each kernel column tile produces 2*tile_d outputs (cos half + sin half).
    half = (dim + 1) // 2
    half_p = _round_up(half, 128)                       # lane-dense bit tiles
    if half_p % 512 == 0:
        tile_d = 512
    elif half_p % 256 == 0:
        tile_d = 256
    else:
        tile_d = 128

    tile_r = min(256, _round_up(rows, 8))               # sublane-aligned row tiles
    rows_p = _round_up(rows, tile_r)
    dim_p = 2 * half_p                                  # >= dim, multiple of 256

    k1, k2 = jax.random.split(key)
    bits1 = jax.random.bits(k1, (rows_p, half_p), dtype=jnp.uint32)
    bits2 = jax.random.bits(k2, (rows_p, half_p), dtype=jnp.uint32)

    grid = (rows_p // tile_r, half_p // tile_d)
    n_out = rows_p * dim_p

    out = pl.pallas_call(
        _box_muller_kernel,
        out_shape=jax.ShapeDtypeStruct((rows_p, dim_p), jnp.float32),
        grid=grid,
        in_specs=[
            pl.BlockSpec((tile_r, tile_d), lambda i, j: (i, j)),
            pl.BlockSpec((tile_r, tile_d), lambda i, j: (i, j)),
        ],
        out_specs=pl.BlockSpec((tile_r, 2 * tile_d), lambda i, j: (i, j)),
        compiler_params=pltpu.CompilerParams(
            dimension_semantics=("parallel", "parallel"),
        ),
        cost_estimate=pl.CostEstimate(
            flops=10 * n_out,                  # shifts/converts/muls per element
            transcendentals=2 * n_out,         # (log+sqrt+cos+sin) per 2 outputs
            bytes_accessed=8 * n_out,          # 4B bits in + 4B f32 out per elem
        ),
    )(bits1, bits2)

    # Drop row/column padding (padding columns are just discarded i.i.d. draws).
    return out[:rows, :dim]


def random_direction(key, dim: int, z=None, same_across_batch: bool = True):
    """Pallas equivalent of RandomDirection(dim).forward(z, same_across_batch)."""
    if z is None:
        return _normal_rows(key, 1, dim)
    if same_across_batch:
        assert z.shape[-1] == dim, "z last dim must equal `dim` for expand()"
        row = _normal_rows(key, 1, dim)
        # expand() is a view in PyTorch; broadcast outside the kernel so the
        # kernel never writes rows*dim to HBM.
        return jnp.broadcast_to(row, z.shape)
    return _normal_rows(key, int(z.shape[0]), dim)


if __name__ == "__main__":
    key = jax.random.PRNGKey(0)
    batch, dim = 2, 32

    zkey, dkey, ikey, bkey = jax.random.split(key, 4)
    # Deterministic example latent z (only its shape matters to the module).
    z = jax.random.normal(zkey, (batch, dim), dtype=jnp.float32)

    # Case 1: z is None -> (1, dim)
    d_none = jax.block_until_ready(random_direction(dkey, dim, z=None))
    assert d_none.shape == (1, dim) and d_none.dtype == jnp.float32
    assert bool(jnp.all(jnp.isfinite(d_none)))

    # Case 2: same_across_batch=True -> (batch, dim), rows identical (expand)
    d_same = jax.block_until_ready(
        random_direction(dkey, dim, z=z, same_across_batch=True)
    )
    assert d_same.shape == (batch, dim)
    assert bool(jnp.all(d_same[0] == d_same[1]))

    # Case 3: same_across_batch=False -> (batch, dim), independent rows
    d_indep = jax.block_until_ready(
        random_direction(ikey, dim, z=z, same_across_batch=False)
    )
    assert d_indep.shape == (batch, dim)
    assert bool(jnp.all(jnp.isfinite(d_indep)))

    # Statistical sanity check on a larger draw (~N(0,1)).
    big = jax.block_until_ready(_normal_rows(bkey, 64, 256))
    assert bool(jnp.all(jnp.isfinite(big)))
    assert abs(float(big.mean())) < 0.1
    assert abs(float(big.std()) - 1.0) < 0.1

    print("KERNEL_OK")
</pallas_src>

<mosaic_0001>
module attributes {stable_mosaic.version = 11 : i64} {
  func.func @_box_muller_kernel(%arg0: i32, %arg1: i32, %arg2: memref<8x128xi32, #tpu.memory_space<vmem>>, %arg3: memref<8x128xi32, #tpu.memory_space<vmem>>, %arg4: memref<8x256xf32, #tpu.memory_space<vmem>>) attributes {dimension_semantics = [#tpu.dimension_semantics<parallel>, #tpu.dimension_semantics<parallel>], iteration_bounds = array<i64: 1, 1>, scalar_prefetch = 0 : i64, scratch_operands = 0 : i64, tpu.core_type = #tpu.core_type<tc>, window_params = [{transform_indices = @transform_0, window_bounds = array<i64: 8, 128>}, {transform_indices = @transform_1, window_bounds = array<i64: 8, 128>}, {transform_indices = @transform_2, window_bounds = array<i64: 8, 256>}]} {
    %c0 = arith.constant 0 : index
    %c0_0 = arith.constant 0 : index
    %0 = vector.load %arg2[%c0, %c0_0] : memref<8x128xi32, #tpu.memory_space<vmem>>, vector<8x128xi32>
    %c8_i32 = arith.constant 8 : i32
    %1 = vector.broadcast %c8_i32 : i32 to vector<8x128xi32>
    %2 = arith.shrui %0, %1 : vector<8x128xi32>
    %3 = arith.uitofp %2 : vector<8x128xi32> to vector<8x128xf32>
    %cst = arith.constant 5.000000e-01 : f32
    %4 = vector.broadcast %cst : f32 to vector<8x128xf32>
    %5 = arith.addf %3, %4 : vector<8x128xf32>
    %cst_1 = arith.constant 5.96046448E-8 : f32
    %6 = vector.broadcast %cst_1 : f32 to vector<8x128xf32>
    %7 = arith.mulf %5, %6 : vector<8x128xf32>
    %c0_2 = arith.constant 0 : index
    %c0_3 = arith.constant 0 : index
    %8 = vector.load %arg3[%c0_2, %c0_3] : memref<8x128xi32, #tpu.memory_space<vmem>>, vector<8x128xi32>
    %c8_i32_4 = arith.constant 8 : i32
    %9 = vector.broadcast %c8_i32_4 : i32 to vector<8x128xi32>
    %10 = arith.shrui %8, %9 : vector<8x128xi32>
    %11 = arith.uitofp %10 : vector<8x128xi32> to vector<8x128xf32>
    %cst_5 = arith.constant 5.96046448E-8 : f32
    %12 = vector.broadcast %cst_5 : f32 to vector<8x128xf32>
    %13 = arith.mulf %11, %12 : vector<8x128xf32>
    %14 = math.log %7 : vector<8x128xf32>
    %cst_6 = arith.constant -2.000000e+00 : f32
    %15 = vector.broadcast %cst_6 : f32 to vector<8x128xf32>
    %16 = arith.mulf %15, %14 : vector<8x128xf32>
    %17 = math.sqrt %16 : vector<8x128xf32>
    %cst_7 = arith.constant 6.28318548 : f32
    %18 = vector.broadcast %cst_7 : f32 to vector<8x128xf32>
    %19 = arith.mulf %18, %13 : vector<8x128xf32>
    %20 = math.cos %19 : vector<8x128xf32>
    %21 = arith.mulf %17, %20 : vector<8x128xf32>
    %c0_8 = arith.constant 0 : index
    %c0_9 = arith.constant 0 : index
    %22 = vector.load %arg4[%c0_8, %c0_9] : memref<8x256xf32, #tpu.memory_space<vmem>>, vector<8x128xf32>
    tpu.vector_store %arg4[%c0_8, %c0_9], %21 {strides = array<i32>} : memref<8x256xf32, #tpu.memory_space<vmem>>, vector<8x128xf32>,
    %23 = math.sin %19 : vector<8x128xf32>
    %24 = arith.mulf %17, %23 : vector<8x128xf32>
    %c0_10 = arith.constant 0 : index
    %c128 = arith.constant 128 : index
    %25 = vector.load %arg4[%c0_10, %c128] : memref<8x256xf32, #tpu.memory_space<vmem>>, vector<8x128xf32>
    tpu.vector_store %arg4[%c0_10, %c128], %24 {strides = array<i32>} : memref<8x256xf32, #tpu.memory_space<vmem>>, vector<8x128xf32>,
    return
  }
  func.func @transform_0(%arg0: i32, %arg1: i32) -> (i32, i32) {
    %c0_i32 = arith.constant 0 : i32
    return %arg0, %arg1 : i32, i32
  }
  func.func @transform_1(%arg0: i32, %arg1: i32) -> (i32, i32) {
    %c0_i32 = arith.constant 0 : i32
    return %arg0, %arg1 : i32, i32
  }
  func.func @transform_2(%arg0: i32, %arg1: i32) -> (i32, i32) {
    %c0_i32 = arith.constant 0 : i32
    return %arg0, %arg1 : i32, i32
  }
}

</mosaic_0001>

<llo_original>
// kernel: tpu_custom_call.1
$region0: #{tpu_custom_call.1}
  #allocation0 [shape = 'u32[]', space=smem, size = 0x4, offset = 0x4, fixed_abs, tag = 'smem constant byte address 0x4 - core index']
  #allocation1 [shape = 'u32[144,128]{1,0:T(1,128)}', space=vmem, size = 0x12000, scoped, tag = 'internal scratch']
  %s0 = inlined_call_operand.hbm [shape: u32[8,128], index: 0, kind: input, shape index: {}]
  %s1 = inlined_call_operand.hbm [shape: u32[8,128], index: 1, kind: input, shape index: {}]
  %s2 = inlined_call_operand.hbm [shape: f32[8,256], index: 2, kind: output, shape index: {}]
  %s3 = sld [smem:[#allocation0]]
  $region26: #{tpu_custom_call.1} parent=0
    _
  %s5 = ssub.s32 1, %s3
  %s6 = scalar_select 0, %s5, %s3
  $region1: #{tpu_custom_call.1} parent=0
    #allocation2 [shape = 'u8[4096]{0}', space=vmem, size = 0x1000, scoped, tag = 'input window, operand 0, single buffered']
    #allocation3 [shape = 's32[1]{0}', space=sflag, size = 0x4, scoped, tag = 'scoped memory for tpu_custom_call.1']
    #allocation4 [shape = 's32[1]{0}', space=sflag, size = 0x4, scoped, tag = 'scoped memory for tpu_custom_call.1']
    #allocation5 [shape = 'u8[4096]{0}', space=vmem, size = 0x1000, scoped, tag = 'input window, operand 1, single buffered']
    #allocation6 [shape = 's32[1]{0}', space=sflag, size = 0x4, scoped, tag = 'scoped memory for tpu_custom_call.1']
    #allocation7 [shape = 'u8[8192]{0}', space=vmem, size = 0x2000, scoped, tag = 'output window, operand 0, single buffered']
    %7 = vsyncpa [#allocation3], 0
    %8 = vsyncpa [#allocation6], 0
    %9 = vsyncpa [#allocation4], 0
    // Predicated region
    $region2: #{tpu_custom_call.1} parent=1 // pred_check
      _
    $region3: #{tpu_custom_call.1} parent=1 // pred_check_branch
      %11 = sbr.rel (0) target = $region5
    $region4: #{tpu_custom_call.1} parent=1 // pred_region
      %s13 = ssub.s32 128, 128
      %14 = vsyncadd [#allocation3], %s13
      %s16 = sshll.u32 [#allocation2], 4
      %s17 = int_to_ptr.vmem [resolvable:$true] %s16
      %19 = dma.hbm_to_vmem [thread:$0]  %s0, 128, %s17, [#allocation3]
    $region5: #{tpu_custom_call.1} parent=1 // pred_fallthru
      _
    // Predicated region
    $region6: #{tpu_custom_call.1} parent=1 // pred_check
      _
    $region7: #{tpu_custom_call.1} parent=1 // pred_check_branch
      %21 = sbr.rel (0) target = $region9
    $region8: #{tpu_custom_call.1} parent=1 // pred_region
      %s23 = ssub.s32 128, 128
      %24 = vsyncadd [#allocation6], %s23
      %s26 = sshll.u32 [#allocation5], 4
      %s27 = int_to_ptr.vmem [resolvable:$true] %s26
      %29 = dma.hbm_to_vmem [thread:$0]  %s1, 128, %s27, [#allocation6]
    $region9: #{tpu_custom_call.1} parent=1 // pred_fallthru
      _
    // Predicated region
    $region10: #{tpu_custom_call.1} parent=1 // pred_check
      _
    $region11: #{tpu_custom_call.1} parent=1 // pred_check_branch
      %31 = sbr.rel (0) target = $region13
    $region12: #{tpu_custom_call.1} parent=1 // pred_region
      %32 = dma.done [#allocation3], 128
    $region13: #{tpu_custom_call.1} parent=1 // pred_fallthru
      _
    // Predicated region
    $region14: #{tpu_custom_call.1} parent=1 // pred_check
      _
    $region15: #{tpu_custom_call.1} parent=1 // pred_check_branch
      %34 = sbr.rel (0) target = $region17
    $region16: #{tpu_custom_call.1} parent=1 // pred_region
      %35 = dma.done [#allocation6], 128
    $region17: #{tpu_custom_call.1} parent=1 // pred_fallthru
      _
    %v36 = vld [vmem:[#allocation2] sm:$0xff]
    %v37 = vshrl.u32 %v36, 8
    %v38 = vshrl.u32 %v37, 16
    %v39 = vand.u32 %v37, 65535
    %v40 = vcvt.s32.f32 %v38
    %v41 = vmul.f32 %v40, 65536.0
    %v42 = vcvt.s32.f32 %v39
    %v43 = vadd.f32 %v41, %v42
    %v44 = vadd.f32 %v43, 0.5
    %v45 = vmul.f32 %v44, 5.9604645e-08
    %v46 = vld [vmem:[#allocation5] sm:$0xff]
    %v47 = vshrl.u32 %v46, 8
    %v48 = vshrl.u32 %v47, 16
    %v49 = vand.u32 %v47, 65535
    %v50 = vcvt.s32.f32 %v48
    %v51 = vmul.f32 %v50, 65536.0
    %v52 = vcvt.s32.f32 %v49
    %v53 = vadd.f32 %v51, %v52
    %v54 = vmul.f32 %v53, 5.9604645e-08
    %v55 = vlog2.pop %v45
    %v56 = vmul.f32 %v55, 0.6931472
    %v57 = vmul.f32 %v56, -2.0
    %v58 = vrsqrt.pop %v57
    %v59 = vmul.f32 %v57, %v58
    %vm60 = vcmp.eq.f32.partialorder %v57, inf
    %v61 = vsel %vm60, %v57, %v59
    %vm62 = vcmp.eq.f32.partialorder %v57, 0.0
    %v63 = vand.u32 %v57, 2147483648
    %v64 = vsel %vm62, %v63, %v61
    %v65 = vmul.f32 %v54, 6.2831855
    %v66 = vand.u32 2147483647, %v65
    %vm67 = vcmp.le.f32.partialorder %v66, 0.7853982
    %vm68 = vcmp.lt.s32.totalorder %v65, 0
    %v69 = vand.u32 %v65, 2139095040
    %v70 = vshrl.u32 %v69, 23
    %v71 = vsub.s32 %v70, 127
    %v72 = vand.u32 2147483647, %v65
    %v73 = vand.u32 %v72, 8388607
    %v74 = vor.u32 %v73, 8388608
    %v75 = vsub.s32 0, %v74
    %v76 = vadd.s32 %v71, 1
    %vm77 = vcmp.gt.s32.totalorder %v76, 0
    %v78 = vsel %vm77, %v76, 0
    %v79 = vshrl.u32 %v78, 5
    %v80 = vand.u32 %v78, 31
    %v81 = vsub.s32 32, %v80
    %v82 = vshrl.u32 683565275, %v81
    %v83 = vshll.u32 683565275, %v80
    %v84 = vshrl.u32 2475754826, %v81
    %v85 = vor.u32 %v83, %v84
    %v86 = vshll.u32 2475754826, %v80
    %v87 = vshrl.u32 2131351028, %v81
    %v88 = vor.u32 %v86, %v87
    %v89 = vshll.u32 2131351028, %v80
    %v90 = vshrl.u32 2102212464, %v81
    %v91 = vor.u32 %v89, %v90
    %v92 = vshll.u32 2102212464, %v80
    %v93 = vshrl.u32 920167782, %v81
    %v94 = vor.u32 %v92, %v93
    %v95 = vshll.u32 920167782, %v80
    %v96 = vshrl.u32 1326507024, %v81
    %v97 = vor.u32 %v95, %v96
    %vm98 = vcmp.lt.s32.totalorder %v79, 1
    %vm99 = vcmp.lt.s32.totalorder %v79, 2
    %vm100 = vcmp.lt.s32.totalorder %v79, 3
    %vm101 = vcmp.lt.s32.totalorder %v79, 4
    %v102 = vsel %vm98, %v82, %v85
    %v103 = vsel %vm101, %v91, 2102212464
    %v104 = vsel %vm100, %v88, %v103
    %v105 = vsel %vm99, %v102, %v104
    %v106 = vsel %vm98, %v85, %v88
    %v107 = vsel %vm101, %v94, 920167782
    %v108 = vsel %vm100, %v91, %v107
    %v109 = vsel %vm99, %v106, %v108
    %v110 = vsel %vm98, %v88, %v91
    %v111 = vsel %vm101, %v97, 1326507024
    %v112 = vsel %vm100, %v94, %v111
    %v113 = vsel %vm99, %v110, %v112
    %v114 = vshll.u32 %v74, 8
    %v115 = vmul.u32.u64.compose %v114, %v113
    %v116 = vextract.low.u32 %v115
    %v117 = vextract.high.u32 %v115
    %v118 = vmul.u32.u64.compose %v114, %v109
    %v119 = vextract.low.u32 %v118
    %v120 = vextract.high.u32 %v118
    %v121 = vmul.u32 %v114, %v105
    %v122 = vadd.s32 %v117, %v119
    %vm123 = vc.u32 %v117, %v119
    %v124 = vadd.s32 %v120, 1
    %v125 = vsel %vm123, %v124, %v120
    %v126 = vadd.s32 %v121, %v125
    %v127 = vadd.s32 %v126, 536870912
    %v128 = vshrl.u32 %v127, 30
    %v129 = vshll.u32 %v128, 30
    %v130 = vsub.s32 %v126, %v129
    %vm131 = vcmp.lt.s32.totalorder %v130, 0
    %v132 = vsub.s32 0, %v130
    %v133 = vsel %vm131, %v132, %v130
    %v134 = vclz %v133
    %v135 = vsub.s32 %v134, 2
    %vm136 = vcmp.gt.s32.totalorder 0, %v135
    %v137 = vsel %vm136, 0, %v135
    %v138 = vsub.s32 32, %v137
    %v139 = vshll.u32 %v130, %v137
    %v140 = vshrl.u32 %v122, %v138
    %v141 = vor.u32 %v139, %v140
    %v142 = vsub.s32 4294967266, %v137
    %v143 = vadd.s32 %v142, 127
    %v144 = vshll.u32 %v143, 23
    %v145 = vor.u32 4788187, %v144
    %v146 = vand.u32 2147483647, %v145
    %v148 = vcvt.s32.f32 %v141
    %v149 = vmul.f32 %v148, %v146
    %v150 = vxor.u32 %v149, 2147483648
    %v151 = vsel %vm68, %v150, %v149
    %v152 = vsub.s32 4, %v128
    %v153 = vsel %vm68, %v152, %v128
    %v154 = vsel %vm67, %v65, %v151
    %v155 = vsel %vm67, 0, %v153
    %v156 = vcosq.f32.pop %v154
    %v157 = vsinq.f32.pop %v154
    %vm158 = vweird.f32 %v65
    %v159 = vand.u32 %v155, 3
    %vm160 = vcmp.lt.s32.totalorder %v159, 2
    %vm161 = vcmp.eq.s32.totalorder %v159, 0
    %v162 = vxor.u32 %v157, 2147483648
    %v163 = vsel %vm161, %v156, %v162
    %vm164 = vcmp.eq.s32.totalorder %v159, 2
    %v165 = vxor.u32 %v156, 2147483648
    %v166 = vsel %vm164, %v165, %v157
    %v167 = vsel %vm160, %v163, %v166
    %v168 = vsel %vm158, nan, %v167
    %v169 = vmul.f32 %v64, %v168
    %170 = vst [vmem:[#allocation7] sm:$0xff] %v169
    %v171 = vand.u32 2147483647, %v65
    %vm172 = vcmp.le.f32.partialorder %v171, 0.7853982
    %vm173 = vcmp.lt.s32.totalorder %v65, 0
    %v174 = vand.u32 %v65, 2139095040
    %v175 = vshrl.u32 %v174, 23
    %v176 = vsub.s32 %v175, 127
    %v177 = vand.u32 2147483647, %v65
    %v178 = vand.u32 %v177, 8388607
    %v179 = vor.u32 %v178, 8388608
    %v180 = vsub.s32 0, %v179
    %v181 = vadd.s32 %v176, 1
    %vm182 = vcmp.gt.s32.totalorder %v181, 0
    %v183 = vsel %vm182, %v181, 0
    %v184 = vshrl.u32 %v183, 5
    %v185 = vand.u32 %v183, 31
    %v186 = vsub.s32 32, %v185
    %v187 = vshrl.u32 683565275, %v186
    %v188 = vshll.u32 683565275, %v185
    %v189 = vshrl.u32 2475754826, %v186
    %v190 = vor.u32 %v188, %v189
    %v191 = vshll.u32 2475754826, %v185
    %v192 = vshrl.u32 2131351028, %v186
    %v193 = vor.u32 %v191, %v192
    %v194 = vshll.u32 2131351028, %v185
    %v195 = vshrl.u32 2102212464, %v186
    %v196 = vor.u32 %v194, %v195
    %v197 = vshll.u32 2102212464, %v185
    %v198 = vshrl.u32 920167782, %v186
    %v199 = vor.u32 %v197, %v198
    %v200 = vshll.u32 920167782, %v185
    %v201 = vshrl.u32 1326507024, %v186
    %v202 = vor.u32 %v200, %v201
    %vm203 = vcmp.lt.s32.totalorder %v184, 1
    %vm204 = vcmp.lt.s32.totalorder %v184, 2
    %vm205 = vcmp.lt.s32.totalorder %v184, 3
    %vm206 = vcmp.lt.s32.totalorder %v184, 4
    %v207 = vsel %vm203, %v187, %v190
    %v208 = vsel %vm206, %v196, 2102212464
    %v209 = vsel %vm205, %v193, %v208
    %v210 = vsel %vm204, %v207, %v209
    %v211 = vsel %vm203, %v190, %v193
    %v212 = vsel %vm206, %v199, 920167782
    %v213 = vsel %vm205, %v196, %v212
    %v214 = vsel %vm204, %v211, %v213
    %v215 = vsel %vm203, %v193, %v196
    %v216 = vsel %vm206, %v202, 1326507024
    %v217 = vsel %vm205, %v199, %v216
    %v218 = vsel %vm204, %v215, %v217
    %v219 = vshll.u32 %v179, 8
    %v220 = vmul.u32.u64.compose %v219, %v218
    %v221 = vextract.low.u32 %v220
    %v222 = vextract.high.u32 %v220
    %v223 = vmul.u32.u64.compose %v219, %v214
    %v224 = vextract.low.u32 %v223
    %v225 = vextract.high.u32 %v223
    %v226 = vmul.u32 %v219, %v210
    %v227 = vadd.s32 %v222, %v224
    %vm228 = vc.u32 %v222, %v224
    %v229 = vadd.s32 %v225, 1
    %v230 = vsel %vm228, %v229, %v225
    %v231 = vadd.s32 %v226, %v230
    %v232 = vadd.s32 %v231, 536870912
    %v233 = vshrl.u32 %v232, 30
    %v234 = vshll.u32 %v233, 30
    %v235 = vsub.s32 %v231, %v234
    %vm236 = vcmp.lt.s32.totalorder %v235, 0
    %v237 = vsub.s32 0, %v235
    %v238 = vsel %vm236, %v237, %v235
    %v239 = vclz %v238
    %v240 = vsub.s32 %v239, 2
    %vm241 = vcmp.gt.s32.totalorder 0, %v240
    %v242 = vsel %vm241, 0, %v240
    %v243 = vsub.s32 32, %v242
    %v244 = vshll.u32 %v235, %v242
    %v245 = vshrl.u32 %v227, %v243
    %v246 = vor.u32 %v244, %v245
    %v247 = vsub.s32 4294967266, %v242
    %v248 = vadd.s32 %v247, 127
    %v249 = vshll.u32 %v248, 23
    %v250 = vor.u32 4788187, %v249
    %v251 = vand.u32 2147483647, %v250
    %v253 = vcvt.s32.f32 %v246
    %v254 = vmul.f32 %v253, %v251
    %v255 = vxor.u32 %v254, 2147483648
    %v256 = vsel %vm173, %v255, %v254
    %v257 = vsub.s32 4, %v233
    %v258 = vsel %vm173, %v257, %v233
    %v259 = vsel %vm172, %v65, %v256
    %v260 = vsel %vm172, 0, %v258
    %v261 = vcosq.f32.pop %v259
    %v262 = vsinq.f32.pop %v259
    %vm263 = vweird.f32 %v65
    %v264 = vadd.s32 %v260, 3
    %v265 = vand.u32 %v264, 3
    %vm266 = vcmp.lt.s32.totalorder %v265, 2
    %vm267 = vcmp.eq.s32.totalorder %v265, 0
    %v268 = vxor.u32 %v262, 2147483648
    %v269 = vsel %vm267, %v261, %v268
    %vm270 = vcmp.eq.s32.totalorder %v265, 2
    %v271 = vxor.u32 %v261, 2147483648
    %v272 = vsel %vm270, %v271, %v262
    %v273 = vsel %vm266, %v269, %v272
    %v274 = vsel %vm263, nan, %v273
    %v275 = vmul.f32 %v64, %v274
    %276 = vst [vmem:[#allocation7 + $0x8] sm:$0xff] %v275
    // Predicated region
    $region18: #{tpu_custom_call.1} parent=1 // pred_check
      _
    $region19: #{tpu_custom_call.1} parent=1 // pred_check_branch
      %278 = sbr.rel (0) target = $region21
    $region20: #{tpu_custom_call.1} parent=1 // pred_region
      %s280 = ssub.s32 256, 256
      %281 = vsyncadd [#allocation4], %s280
      %s283 = sshll.u32 [#allocation7], 4
      %s284 = int_to_ptr.vmem [resolvable:$true] %s283
      %286 = dma.vmem_to_hbm [thread:$0]  %s284, 256, %s2, [#allocation4]
    $region21: #{tpu_custom_call.1} parent=1 // pred_fallthru
      _
    // Predicated region
    $region22: #{tpu_custom_call.1} parent=1 // pred_check
      _
    $region23: #{tpu_custom_call.1} parent=1 // pred_check_branch
      %288 = sbr.rel (0) target = $region25
    $region24: #{tpu_custom_call.1} parent=1 // pred_region
      %289 = dma.done [#allocation4], 256
    $region25: #{tpu_custom_call.1} parent=1 // pred_fallthru
      _
    %290 = vsyncpa [#allocation3], 1
    %291 = vsyncpa [#allocation6], 1
    %292 = vsyncpa [#allocation4], 1

</llo_original>
